<compile_context>
chip_gen: v7x
topology: tpu7x:2x2x1
jax: 0.10.0
libtpu: 0.0.40
codegen_flags: <defaults>
</compile_context>

<pallas_src>
import functools

import jax
import jax.numpy as jnp
from jax.experimental import pallas as pl
from jax.experimental.pallas import tpu as pltpu

LANES = 128      # lane width: padded hidden dim and padded output dim
STATE_PAD = 16   # state_dim padded to one full bf16 sublane tile
BIAS_ROWS = 24   # 3 biases, each on its own 8-row-aligned row


def _round_up(n, m):
    return (n + m - 1) // m * m


def weight_slab_layout(hidden_pad=LANES):
    """Row offsets of each weight section inside the packed bf16 slab."""
    r_w2 = STATE_PAD                 # w1 occupies rows [0, STATE_PAD)
    r_w3 = STATE_PAD + hidden_pad    # w2 occupies rows [r_w2, r_w3)
    n_rows = STATE_PAD + 2 * hidden_pad
    return r_w2, r_w3, n_rows


def pack_params(params, state_dim, hidden_dim, action_dim, hidden_pad=LANES):
    """Pack weights into one bf16 (n_rows, 128) slab and biases into an f32 (24, 128) slab."""
    w1, b1, w2, b2, w3, b3 = params
    assert state_dim <= STATE_PAD
    assert hidden_dim <= hidden_pad and action_dim <= LANES
    r_w2, r_w3, n_rows = weight_slab_layout(hidden_pad)

    w = jnp.zeros((n_rows, LANES), jnp.float32)
    w = w.at[0:state_dim, 0:hidden_dim].set(w1)
    w = w.at[r_w2:r_w2 + hidden_dim, 0:hidden_dim].set(w2)
    w = w.at[r_w3:r_w3 + hidden_dim, 0:action_dim].set(w3)

    b = jnp.zeros((BIAS_ROWS, LANES), jnp.float32)
    b = b.at[0, 0:hidden_dim].set(b1[0])
    b = b.at[8, 0:hidden_dim].set(b2[0])
    b = b.at[16, 0:action_dim].set(b3[0])
    return w.astype(jnp.bfloat16), b


def _policy_kernel(x_ref, w_ref, b_ref, out_ref, *, A, HP, r_w2, r_w3):
    # Tile-aligned static views into the packed parameter slabs.
    w1 = w_ref[0:STATE_PAD, :]          # (16, HP)  bf16
    w2 = w_ref[r_w2:r_w2 + HP, :]       # (HP, HP)  bf16
    w3 = w_ref[r_w3:r_w3 + HP, :]       # (HP, HP)  bf16
    b1 = b_ref[0:1, :]                  # (1, HP)   f32
    b2 = b_ref[8:9, :]                  # (1, HP)   f32
    b3 = b_ref[16:17, :]                # (1, HP)   f32

    x = x_ref[...].astype(jnp.bfloat16)  # (TB, 16)

    # Linear(state -> hidden) + ReLU   (bf16 MXU, f32 accumulate)
    h1 = jnp.dot(x, w1, preferred_element_type=jnp.float32) + b1
    h1 = jnp.maximum(h1, 0.0)

    # Linear(hidden -> hidden) + ReLU
    h2 = jnp.dot(h1.astype(jnp.bfloat16), w2,
                 preferred_element_type=jnp.float32) + b2
    h2 = jnp.maximum(h2, 0.0)

    # Linear(hidden -> action), lane-padded to HP output lanes
    logits = jnp.dot(h2.astype(jnp.bfloat16), w3,
                     preferred_element_type=jnp.float32) + b3

    # Mask padded output lanes so they don't pollute the max / softmax denom.
    lane = jax.lax.broadcasted_iota(jnp.int32, logits.shape, 1)
    logits = jnp.where(lane < A, logits, -1e30)

    # logits - max(logits, dim=-1, keepdim=True), then softmax(dim=-1)
    logits = logits - jnp.max(logits, axis=-1, keepdims=True)
    e = jnp.exp(logits)
    denom = jnp.sum(e, axis=-1, keepdims=True)
    out_ref[...] = e * pl.reciprocal(denom, approx=False)


def policy_forward(x, w_slab, b_slab, *, state_dim, action_dim,
                   hidden_pad=LANES, tb=128):
    """x: (B, state_dim) f32 -> (B, action_dim) softmax probabilities."""
    B, S = x.shape
    assert S == state_dim
    r_w2, r_w3, n_rows = weight_slab_layout(hidden_pad)
    assert w_slab.shape == (n_rows, LANES) and w_slab.dtype == jnp.bfloat16
    assert b_slab.shape == (BIAS_ROWS, LANES) and b_slab.dtype == jnp.float32

    # Pad batch to a multiple of the tile and the state dim to 16 columns.
    B_pad = _round_up(B, tb)
    x_p = jnp.pad(x, ((0, B_pad - B), (0, STATE_PAD - S)))

    kernel = functools.partial(
        _policy_kernel, A=action_dim, HP=hidden_pad, r_w2=r_w2, r_w3=r_w3)

    out = pl.pallas_call(
        kernel,
        out_shape=jax.ShapeDtypeStruct((B_pad, LANES), jnp.float32),
        grid=(B_pad // tb,),
        in_specs=[
            pl.BlockSpec((tb, STATE_PAD), lambda i: (i, 0)),      # batch tile of x
            pl.BlockSpec((n_rows, LANES), lambda i: (0, 0)),      # bf16 weight slab
            pl.BlockSpec((BIAS_ROWS, LANES), lambda i: (0, 0)),   # f32 bias slab
        ],
        out_specs=pl.BlockSpec((tb, LANES), lambda i: (i, 0)),    # lane-dense output
        compiler_params=pltpu.CompilerParams(
            dimension_semantics=("parallel",)),
    )(x_p, w_slab, b_slab)

    return out[:B, :action_dim]


def init_params(key, state_dim, action_dim, hidden_dim=64):
    """PyTorch nn.Linear-style init (U[-1/sqrt(fan_in), +1/sqrt(fan_in)]).
    Weights stored transposed: (in_features, out_features); biases (1, out)."""
    def linear(k, fan_in, fan_out):
        kw, kb = jax.random.split(k)
        bound = 1.0 / jnp.sqrt(fan_in)
        w = jax.random.uniform(kw, (fan_in, fan_out), jnp.float32, -bound, bound)
        b = jax.random.uniform(kb, (1, fan_out), jnp.float32, -bound, bound)
        return w, b

    k1, k2, k3 = jax.random.split(key, 3)
    w1, b1 = linear(k1, state_dim, hidden_dim)
    w2, b2 = linear(k2, hidden_dim, hidden_dim)
    w3, b3 = linear(k3, hidden_dim, action_dim)
    return (w1, b1, w2, b2, w3, b3)


def policy_forward_ref(x, params):
    """Pure-JAX f32 reference."""
    w1, b1, w2, b2, w3, b3 = params
    h1 = jnp.maximum(x @ w1 + b1, 0.0)
    h2 = jnp.maximum(h1 @ w2 + b2, 0.0)
    logits = h2 @ w3 + b3
    logits = logits - jnp.max(logits, axis=-1, keepdims=True)
    return jax.nn.softmax(logits, axis=-1)


def policy_forward_ref_bf16(x, params):
    """Pure-JAX reference matching the kernel's bf16-matmul / f32-accumulate path."""
    w1, b1, w2, b2, w3, b3 = params
    bf = jnp.bfloat16
    dot = lambda a, b: jnp.dot(a.astype(bf), b.astype(bf),
                               preferred_element_type=jnp.float32)
    h1 = jnp.maximum(dot(x, w1) + b1, 0.0)
    h2 = jnp.maximum(dot(h1, w2) + b2, 0.0)
    logits = dot(h2, w3) + b3
    logits = logits - jnp.max(logits, axis=-1, keepdims=True)
    return jax.nn.softmax(logits, axis=-1)


if __name__ == "__main__":
    state_dim, action_dim, hidden_dim = 4, 2, 64   # CartPole dims
    batch = 256                                    # 2 batch tiles -> exercises the parallel grid

    key = jax.random.PRNGKey(0)
    kx, kp = jax.random.split(key)
    x = jax.random.normal(kx, (batch, state_dim), dtype=jnp.float32)
    params = init_params(kp, state_dim, action_dim, hidden_dim)
    w_slab, b_slab = pack_params(params, state_dim, hidden_dim, action_dim)

    out = policy_forward(x, w_slab, b_slab,
                         state_dim=state_dim, action_dim=action_dim)
    out = jax.block_until_ready(out)

    ref_f32 = policy_forward_ref(x, params)
    ref_bf16 = policy_forward_ref_bf16(x, params)

    assert out.shape == (batch, action_dim)
    assert jnp.allclose(jnp.sum(out, axis=-1), 1.0, atol=1e-5)
    # Tight check against a reference using the same bf16-matmul path.
    assert jnp.allclose(out, ref_bf16, atol=5e-3, rtol=5e-3)
    # Loose check against the pure-f32 reference (bf16 MXU rounding).
    assert jnp.allclose(out, ref_f32, atol=2e-2)

    print("KERNEL_OK")
</pallas_src>

<mosaic_0001>
module attributes {stable_mosaic.version = 11 : i64} {
  func.func @_policy_kernel(%arg0: i32, %arg1: memref<128x16xf32, #tpu.memory_space<vmem>>, %arg2: memref<272x128xbf16, #tpu.memory_space<vmem>>, %arg3: memref<24x128xf32, #tpu.memory_space<vmem>>, %arg4: memref<128x128xf32, #tpu.memory_space<vmem>>) attributes {dimension_semantics = [#tpu.dimension_semantics<parallel>], iteration_bounds = array<i64: 2>, scalar_prefetch = 0 : i64, scratch_operands = 0 : i64, tpu.core_type = #tpu.core_type<tc>, window_params = [{transform_indices = @transform_0, window_bounds = array<i64: 128, 16>}, {pipeline_mode = #tpu.pipeline_mode<synchronous>, transform_indices = @transform_1, window_bounds = array<i64: 272, 128>}, {pipeline_mode = #tpu.pipeline_mode<synchronous>, transform_indices = @transform_2, window_bounds = array<i64: 24, 128>}, {transform_indices = @transform_3, window_bounds = array<i64: 128, 128>}]} {
    %c0 = arith.constant 0 : index
    %c0_0 = arith.constant 0 : index
    %0 = vector.load %arg2[%c0, %c0_0] : memref<272x128xbf16, #tpu.memory_space<vmem>>, vector<16x128xbf16>
    %c16 = arith.constant 16 : index
    %c0_1 = arith.constant 0 : index
    %1 = vector.load %arg2[%c16, %c0_1] : memref<272x128xbf16, #tpu.memory_space<vmem>>, vector<128x128xbf16>
    %c144 = arith.constant 144 : index
    %c0_2 = arith.constant 0 : index
    %2 = vector.load %arg2[%c144, %c0_2] : memref<272x128xbf16, #tpu.memory_space<vmem>>, vector<128x128xbf16>
    %c0_3 = arith.constant 0 : index
    %c0_4 = arith.constant 0 : index
    %3 = vector.load %arg3[%c0_3, %c0_4] : memref<24x128xf32, #tpu.memory_space<vmem>>, vector<1x128xf32>
    %c8 = arith.constant 8 : index
    %c0_5 = arith.constant 0 : index
    %4 = vector.load %arg3[%c8, %c0_5] : memref<24x128xf32, #tpu.memory_space<vmem>>, vector<1x128xf32>
    %c16_6 = arith.constant 16 : index
    %c0_7 = arith.constant 0 : index
    %5 = vector.load %arg3[%c16_6, %c0_7] : memref<24x128xf32, #tpu.memory_space<vmem>>, vector<1x128xf32>
    %c0_8 = arith.constant 0 : index
    %c0_9 = arith.constant 0 : index
    %6 = vector.load %arg1[%c0_8, %c0_9] : memref<128x16xf32, #tpu.memory_space<vmem>>, vector<128x16xf32>
    %7 = arith.truncf %6 : vector<128x16xf32> to vector<128x16xbf16>
    %cst = arith.constant dense<0.000000e+00> : vector<128x128xf32>
    %8 = tpu.matmul %7, %0, %cst {dimension_numbers = #tpu.dot_dimension_numbers<[1], [0], [0], [1], [0, 0, 1, 1], [], []>} : vector<128x16xbf16>, vector<16x128xbf16>, vector<128x128xf32> -> vector<128x128xf32>
    %9 = vector.broadcast %3 : vector<1x128xf32> to vector<128x128xf32>
    %10 = arith.addf %8, %9 : vector<128x128xf32>
    %cst_10 = arith.constant 0.000000e+00 : f32
    %11 = vector.broadcast %cst_10 : f32 to vector<128x128xf32>
    %12 = arith.maximumf %10, %11 : vector<128x128xf32>
    %13 = arith.truncf %12 : vector<128x128xf32> to vector<128x128xbf16>
    %cst_11 = arith.constant dense<0.000000e+00> : vector<128x128xf32>
    %14 = tpu.matmul %13, %1, %cst_11 {dimension_numbers = #tpu.dot_dimension_numbers<[1], [0], [0], [1], [0, 0, 1, 1], [], []>} : vector<128x128xbf16>, vector<128x128xbf16>, vector<128x128xf32> -> vector<128x128xf32>
    %15 = vector.broadcast %4 : vector<1x128xf32> to vector<128x128xf32>
    %16 = arith.addf %14, %15 : vector<128x128xf32>
    %cst_12 = arith.constant 0.000000e+00 : f32
    %17 = vector.broadcast %cst_12 : f32 to vector<128x128xf32>
    %18 = arith.maximumf %16, %17 : vector<128x128xf32>
    %19 = arith.truncf %18 : vector<128x128xf32> to vector<128x128xbf16>
    %cst_13 = arith.constant dense<0.000000e+00> : vector<128x128xf32>
    %20 = tpu.matmul %19, %2, %cst_13 {dimension_numbers = #tpu.dot_dimension_numbers<[1], [0], [0], [1], [0, 0, 1, 1], [], []>} : vector<128x128xbf16>, vector<128x128xbf16>, vector<128x128xf32> -> vector<128x128xf32>
    %21 = vector.broadcast %5 : vector<1x128xf32> to vector<128x128xf32>
    %22 = arith.addf %20, %21 : vector<128x128xf32>
    %23 = tpu.iota {dimensions = array<i32: 1>} : vector<128x128xi32>
    %c2_i32 = arith.constant 2 : i32
    %24 = vector.broadcast %c2_i32 : i32 to vector<128x128xi32>
    %25 = arith.cmpi slt, %23, %24 : vector<128x128xi32>
    %cst_14 = arith.constant -1.000000e+30 : f32
    %26 = vector.broadcast %cst_14 : f32 to vector<128x128xf32>
    %27 = arith.select %25, %22, %26 : vector<128x128xi1>, vector<128x128xf32>
    %cst_15 = arith.constant dense<0xFF800000> : vector<128xf32>
    %28 = vector.multi_reduction <maximumf>, %27, %cst_15 [1] : vector<128x128xf32> to vector<128xf32>
    %29 = vector.shape_cast %28 : vector<128xf32> to vector<128x1xf32>
    %30 = vector.broadcast %29 : vector<128x1xf32> to vector<128x128xf32>
    %31 = arith.subf %27, %30 : vector<128x128xf32>
    %32 = math.exp %31 : vector<128x128xf32>
    %cst_16 = arith.constant dense<0.000000e+00> : vector<128xf32>
    %33 = vector.multi_reduction <add>, %32, %cst_16 [1] : vector<128x128xf32> to vector<128xf32>
    %34 = vector.shape_cast %33 : vector<128xf32> to vector<128x1xf32>
    %35 = tpu.reciprocal %34 : vector<128x1xf32> -> vector<128x1xf32>
    %36 = vector.broadcast %35 : vector<128x1xf32> to vector<128x128xf32>
    %37 = arith.mulf %32, %36 : vector<128x128xf32>
    %c0_17 = arith.constant 0 : index
    %c0_18 = arith.constant 0 : index
    %38 = vector.load %arg4[%c0_17, %c0_18] : memref<128x128xf32, #tpu.memory_space<vmem>>, vector<128x128xf32>
    tpu.vector_store %arg4[%c0_17, %c0_18], %37 {strides = array<i32>} : memref<128x128xf32, #tpu.memory_space<vmem>>, vector<128x128xf32>,
    return
  }
  func.func @transform_0(%arg0: i32) -> (i32, i32) {
    %c0_i32 = arith.constant 0 : i32
    %c0_i32_0 = arith.constant 0 : i32
    return %arg0, %c0_i32 : i32, i32
  }
  func.func @transform_1(%arg0: i32) -> (i32, i32) {
    %c0_i32 = arith.constant 0 : i32
    %c0_i32_0 = arith.constant 0 : i32
    %c0_i32_1 = arith.constant 0 : i32
    return %c0_i32, %c0_i32_0 : i32, i32
  }
  func.func @transform_2(%arg0: i32) -> (i32, i32) {
    %c0_i32 = arith.constant 0 : i32
    %c0_i32_0 = arith.constant 0 : i32
    %c0_i32_1 = arith.constant 0 : i32
    return %c0_i32, %c0_i32_0 : i32, i32
  }
  func.func @transform_3(%arg0: i32) -> (i32, i32) {
    %c0_i32 = arith.constant 0 : i32
    %c0_i32_0 = arith.constant 0 : i32
    return %arg0, %c0_i32 : i32, i32
  }
}

</mosaic_0001>

<llo_original>
// kernel: tpu_custom_call.1
$region0: #{tpu_custom_call.1}
  #allocation0 [shape = 'u32[]', space=smem, size = 0x4, offset = 0x4, fixed_abs, tag = 'smem constant byte address 0x4 - core index']
  #allocation1 [shape = 'u32[144,128]{1,0:T(1,128)}', space=vmem, size = 0x12000, scoped, tag = 'internal scratch']
  %s0 = inlined_call_operand.vmem [shape: f32[256,16], index: 0, kind: input, shape index: {}]
  %s1 = inlined_call_operand.vmem [shape: bf16[272,128], index: 1, kind: input, shape index: {}]
  %s2 = inlined_call_operand.vmem [shape: f32[24,128], index: 2, kind: input, shape index: {}]
  %s3 = inlined_call_operand.hbm [shape: f32[256,128], index: 3, kind: output, shape index: {}]
  %s4 = sld [smem:[#allocation0]]
  $region45: #{tpu_custom_call.1} parent=0
    _
  %s6 = ssub.s32 1, %s4
  %s7 = scalar_select 0, %s6, %s4
  $region1: #{tpu_custom_call.1} parent=0
    #allocation2 [shape = 'u8[131072]{0}', space=vmem, size = 0x20000, scoped, tag = 'output window, operand 0']
    #allocation3 [shape = 's32[2]{0}', space=sflag, size = 0x8, scoped, tag = 'scoped memory for tpu_custom_call.1']
    %8 = vsyncpa [#allocation3], 0
    %s9 = scalar_lea.sflag [#allocation3], 1
    %10 = vsyncpa %s9, 0
    loop: start=0, step=1, limit=4
    $region2: #{tpu_custom_call.1} parent=1 // loop_pre_header
      _
    $region3: #{tpu_custom_call.1} parent=1 // loop_header
      %s12 = sphi 0, %s16
      %p13 = scmp.ge.s32.totalorder %s12, 4
      %s22 = sphi 0, %s24
      %s25 = sphi 0, %s22
      %s26 = sphi 0, %s25
      %s42 = sphi 0, %s26
      %s46 = sphi 0, %s46
      %s48 = sphi 0, %s46
      %s49 = sphi 0, %s48
      %s63 = sphi 0, %s49
      %s67 = sphi 0, %s67
      %s69 = sphi 0, %s67
      %s70 = sphi 0, %s69
      %s84 = sphi 0, %s70
      %s90 = sphi 0, %s92
      %s93 = sphi 0, %s90
      %s94 = sphi 0, %s93
      %s110 = sphi 0, %s94
    $region4: #{tpu_custom_call.1} parent=1 // loop_header_branch
      %15 = sbr.rel (%p13) target = $region8
    $region5: #{tpu_custom_call.1} parent=1 // loop_body
      %s17 = ssub.s32 %s12, 1
      %s18 = ssub.s32 %s12, 2
      %s19 = sadd.s32 %s12, 1
      %s20 = ssub.s32 %s12, %s19
      %p21 = scmp.eq.s32.totalorder %s20, 0
      %s23 = sadd.s32 %s22, 1
      %s24 = scalar_select %p21, %s22, %s23
      %p27 = pneg %p21
      %p28 = scmp.eq.s32.totalorder %s12, 1
      %p29 = por %p27, %p28
      %p30 = scmp.ne.s32.totalorder %s22, %s25
      %p31 = scmp.eq.s32.totalorder %s12, 0
      %p32 = por %p30, %p31
      %p33 = scmp.ne.s32.totalorder %s22, %s25
      %p34 = scmp.eq.s32.totalorder %s17, 1
      %p35 = por %p33, %p34
      %p36 = scmp.ne.s32.totalorder %s25, %s26
      %p37 = scmp.eq.s32.totalorder %s17, 0
      %p38 = por %p36, %p37
      %p39 = scmp.ne.s32.totalorder %s25, %s26
      %p40 = scmp.eq.s32.totalorder %s18, 1
      %p41 = por %p39, %p40
      %p43 = scmp.ne.s32.totalorder %s26, %s42
      %p44 = scmp.eq.s32.totalorder %s18, 0
      %p45 = por %p43, %p44
      %s47 = sadd.s32 %s46, 1
      %p50 = scmp.eq.s32.totalorder %s12, 1
      %p51 = scmp.ne.s32.totalorder %s46, %s48
      %p52 = scmp.eq.s32.totalorder %s12, 0
      %p53 = por %p51, %p52
      %p54 = scmp.ne.s32.totalorder %s46, %s48
      %p55 = scmp.eq.s32.totalorder %s17, 1
      %p56 = por %p54, %p55
      %p57 = scmp.ne.s32.totalorder %s48, %s49
      %p58 = scmp.eq.s32.totalorder %s17, 0
      %p59 = por %p57, %p58
      %p60 = scmp.ne.s32.totalorder %s48, %s49
      %p61 = scmp.eq.s32.totalorder %s18, 1
      %p62 = por %p60, %p61
      %p64 = scmp.ne.s32.totalorder %s49, %s63
      %p65 = scmp.eq.s32.totalorder %s18, 0
      %p66 = por %p64, %p65
      %s68 = sadd.s32 %s67, 1
      %p71 = scmp.eq.s32.totalorder %s12, 1
      %p72 = scmp.ne.s32.totalorder %s67, %s69
      %p73 = scmp.eq.s32.totalorder %s12, 0
      %p74 = por %p72, %p73
      %p75 = scmp.ne.s32.totalorder %s67, %s69
      %p76 = scmp.eq.s32.totalorder %s17, 1
      %p77 = por %p75, %p76
      %p78 = scmp.ne.s32.totalorder %s69, %s70
      %p79 = scmp.eq.s32.totalorder %s17, 0
      %p80 = por %p78, %p79
      %p81 = scmp.ne.s32.totalorder %s69, %s70
      %p82 = scmp.eq.s32.totalorder %s18, 1
      %p83 = por %p81, %p82
      %p85 = scmp.ne.s32.totalorder %s70, %s84
      %p86 = scmp.eq.s32.totalorder %s18, 0
      %p87 = por %p85, %p86
      %s88 = ssub.s32 %s12, %s19
      %p89 = scmp.eq.s32.totalorder %s88, 0
      %s91 = sadd.s32 %s90, 1
      %s92 = scalar_select %p89, %s90, %s91
      %p95 = pneg %p89
      %p96 = scmp.eq.s32.totalorder %s12, 1
      %p97 = por %p95, %p96
      %p98 = scmp.ne.s32.totalorder %s90, %s93
      %p99 = scmp.eq.s32.totalorder %s12, 0
      %p100 = por %p98, %p99
      %p101 = scmp.ne.s32.totalorder %s90, %s93
      %p102 = scmp.eq.s32.totalorder %s17, 1
      %p103 = por %p101, %p102
      %p104 = scmp.ne.s32.totalorder %s93, %s94
      %p105 = scmp.eq.s32.totalorder %s17, 0
      %p106 = por %p104, %p105
      %p107 = scmp.ne.s32.totalorder %s93, %s94
      %p108 = scmp.eq.s32.totalorder %s18, 1
      %p109 = por %p107, %p108
      %p111 = scmp.ne.s32.totalorder %s94, %s110
      %p112 = scmp.eq.s32.totalorder %s18, 0
      %p113 = por %p111, %p112
      %p114 = scmp.le.s32.totalorder 1, %s12
      %p115 = scmp.lt.s32.totalorder %s12, 3
      %p116 = pnand %p114, %p115
      %p117 = pneg %p116
      // Predicated region
      $region9: #{tpu_custom_call.1} parent=5 // pred_check
        _
      $region10: #{tpu_custom_call.1} parent=5 // pred_check_branch
        %119 = sbr.rel (%p116) target = $region12
      $region11: #{tpu_custom_call.1} parent=5 // pred_region
        %s120 = ssub.s32 %s12, 1
        // Predicated region
        $region13: #{tpu_custom_call.1} parent=11 // pred_check
          %p121 = pneg %p59
        $region14: #{tpu_custom_call.1} parent=11 // pred_check_branch
          %123 = sbr.rel (%p121) target = $region16
        $region15: #{tpu_custom_call.1} parent=11 // pred_region
          _
        $region16: #{tpu_custom_call.1} parent=11 // pred_fallthru
          _
        // Predicated region
        $region17: #{tpu_custom_call.1} parent=11 // pred_check
          %p124 = pneg %p80
        $region18: #{tpu_custom_call.1} parent=11 // pred_check_branch
          %126 = sbr.rel (%p124) target = $region20
        $region19: #{tpu_custom_call.1} parent=11 // pred_region
          _
        $region20: #{tpu_custom_call.1} parent=11 // pred_fallthru
          _
      $region12: #{tpu_custom_call.1} parent=5 // pred_fallthru
        _
      %p127 = scmp.lt.s32.totalorder %s12, 2
      // Predicated region
      $region21: #{tpu_custom_call.1} parent=5 // pred_check
        %p128 = pneg %p127
      $region22: #{tpu_custom_call.1} parent=5 // pred_check_branch
        %130 = sbr.rel (%p128) target = $region24
      $region23: #{tpu_custom_call.1} parent=5 // pred_region
        // Predicated region
        $region25: #{tpu_custom_call.1} parent=23 // pred_check
          %p131 = pneg %p32
        $region26: #{tpu_custom_call.1} parent=23 // pred_check_branch
          %133 = sbr.rel (%p131) target = $region28
        $region27: #{tpu_custom_call.1} parent=23 // pred_region
          %s134 = smul.u32 16, %s12
          %p135 = scmp.lt.s32.totalorder %s134, 31
          %s136 = scalar_select %p135, %s134, 31
          %s137 = smul.addr %s136, 8
          %s138 = scalar_lea.vmem %s0, %s137
          %s139 = smul.u32 16, %s12
        $region28: #{tpu_custom_call.1} parent=23 // pred_fallthru
          _
      $region24: #{tpu_custom_call.1} parent=5 // pred_fallthru
        _
      %p140 = scmp.le.s32.totalorder 1, %s12
      %p141 = scmp.lt.s32.totalorder %s12, 3
      %p142 = pnand %p140, %p141
      %p143 = pneg %p142
      // Predicated region
      $region29: #{tpu_custom_call.1} parent=5 // pred_check
        _
      $region30: #{tpu_custom_call.1} parent=5 // pred_check_branch
        %145 = sbr.rel (%p142) target = $region32
      $region31: #{tpu_custom_call.1} parent=5 // pred_region
        %s146 = ssub.s32 %s12, 1
        %s147 = smul.u32 16, %s17
        %p148 = scmp.lt.s32.totalorder %s147, 31
        %s149 = scalar_select %p148, %s147, 31
        %s150 = smul.addr %s149, 8
        %s151 = scalar_lea.vmem %s0, %s150
        %p152 = pneg %p38
        %p153 = pneg %p35
        %p154 = pneg %p59
        %p155 = pneg %p56
        %p156 = pneg %p80
        %p157 = pneg %p77
        %p158 = pneg %p106
        %p159 = pneg %p103
        %s160 = sand.u32 %s93, 1
        %s161 = scalar_lea.sflag [#allocation3], %s160
        %s162 = sand.u32 %s93, 1
        %s163 = smul.addr %s162, 128
        %s164 = scalar_lea.vmem [#allocation2], %s163
        %s165 = smul.u32 16, %s17
        %p166 = scmp.lt.s32.totalorder %s165, 31
        %s167 = scalar_select %p166, %s165, 31
        %s168 = smul.addr %s167, 8
        %s169 = scalar_lea.vmem %s0, %s168
        %s170 = smul.u32 16, %s17
        %s171 = smul.u32 16, %s17
        %v173 = vld [vmem:[%s1] sm:$0xf]
        %v174 = vld [vmem:[%s1 + $0x4] sm:$0xf]
        %v175 = vld [vmem:[%s1 + $0x8] sm:$0xf]
        %v176 = vld [vmem:[%s1 + $0xc] sm:$0xf]
        %v177 = vld [vmem:[%s1 + $0x10] sm:$0xf]
        %v178 = vld [vmem:[%s1 + $0x14] sm:$0xf]
        %v179 = vld [vmem:[%s1 + $0x18] sm:$0xf]
        %v180 = vld [vmem:[%s1 + $0x1c] sm:$0xf]
        %v181 = vld [vmem:[%s1 + $0x20] sm:$0xf]
        %v182 = vld [vmem:[%s1 + $0x24] sm:$0xf]
        %v183 = vld [vmem:[%s1 + $0x28] sm:$0xf]
        %v184 = vld [vmem:[%s1 + $0x2c] sm:$0xf]
        %v185 = vld [vmem:[%s1 + $0x30] sm:$0xf]
        %v186 = vld [vmem:[%s1 + $0x34] sm:$0xf]
        %v187 = vld [vmem:[%s1 + $0x38] sm:$0xf]
        %v188 = vld [vmem:[%s1 + $0x3c] sm:$0xf]
        %v189 = vld [vmem:[%s1 + $0x40] sm:$0xf]
        %v190 = vld [vmem:[%s1 + $0x44] sm:$0xf]
        %v191 = vld [vmem:[%s1 + $0x48] sm:$0xf]
        %v192 = vld [vmem:[%s1 + $0x4c] sm:$0xf]
        %v193 = vld [vmem:[%s1 + $0x50] sm:$0xf]
        %v194 = vld [vmem:[%s1 + $0x54] sm:$0xf]
        %v195 = vld [vmem:[%s1 + $0x58] sm:$0xf]
        %v196 = vld [vmem:[%s1 + $0x5c] sm:$0xf]
        %v197 = vld [vmem:[%s1 + $0x60] sm:$0xf]
        %v198 = vld [vmem:[%s1 + $0x64] sm:$0xf]
        %v199 = vld [vmem:[%s1 + $0x68] sm:$0xf]
        %v200 = vld [vmem:[%s1 + $0x6c] sm:$0xf]
        %v201 = vld [vmem:[%s1 + $0x70] sm:$0xf]
        %v202 = vld [vmem:[%s1 + $0x74] sm:$0xf]
        %v203 = vld [vmem:[%s1 + $0x78] sm:$0xf]
        %v204 = vld [vmem:[%s1 + $0x7c] sm:$0xf]
        %v205 = vld [vmem:[%s1 + $0x80] sm:$0xf]
        %v206 = vld [vmem:[%s1 + $0x84] sm:$0xf]
        %v207 = vld [vmem:[%s2] sm:$0x1]
        %v208 = vld [vmem:[%s2 + $0x8] sm:$0x1]
        %v209 = vld [vmem:[%s2 + $0x10] sm:$0x1]
        %v210 = vld [vmem:[%s169] sm:$0xff]
        %v211 = vld [vmem:[%s169 + $0x8] sm:$0xff]
        %v212 = vld [vmem:[%s169 + $0x10] sm:$0xff]
        %v213 = vld [vmem:[%s169 + $0x18] sm:$0xff]
        %v214 = vld [vmem:[%s169 + $0x20] sm:$0xff]
        %v215 = vld [vmem:[%s169 + $0x28] sm:$0xff]
        %v216 = vld [vmem:[%s169 + $0x30] sm:$0xff]
        %v217 = vld [vmem:[%s169 + $0x38] sm:$0xff]
        %v218 = vld [vmem:[%s169 + $0x40] sm:$0xff]
        %v219 = vld [vmem:[%s169 + $0x48] sm:$0xff]
        %v220 = vld [vmem:[%s169 + $0x50] sm:$0xff]
        %v221 = vld [vmem:[%s169 + $0x58] sm:$0xff]
        %v222 = vld [vmem:[%s169 + $0x60] sm:$0xff]
        %v223 = vld [vmem:[%s169 + $0x68] sm:$0xff]
        %v224 = vld [vmem:[%s169 + $0x70] sm:$0xff]
        %v225 = vld [vmem:[%s169 + $0x78] sm:$0xff]
        %v226 = vpack.c.bf16 %v211, %v210
        %v227 = vpack.c.bf16 %v213, %v212
        %v228 = vpack.c.bf16 %v215, %v214
        %v229 = vpack.c.bf16 %v217, %v216
        %v230 = vpack.c.bf16 %v219, %v218
        %v231 = vpack.c.bf16 %v221, %v220
        %v232 = vpack.c.bf16 %v223, %v222
        %v233 = vpack.c.bf16 %v225, %v224
        %v234 = vlaneseq
        %v235 = vshrl.u32 %v234, 7
        %v236 = vsub.s32 0, %v235
        %v237 = vrot.slane %v207, %v236
        %v240 = vunpack.c.l.b16 %v173
        %v241 = vunpack.c.l.b16 %v174
        %v242 = vpack.c.b16 %v241, %v240
        %vm244 = vcmask 130048
        %v246 = vsel %vm244, %v226, 0
        %v249 = vsel %vm244, %v227, 0
        %v252 = vsel %vm244, %v228, 0
        %v255 = vsel %vm244, %v229, 0
        %v258 = vsel %vm244, %v230, 0
        %v261 = vsel %vm244, %v231, 0
        %v264 = vsel %vm244, %v232, 0
        %v267 = vsel %vm244, %v233, 0
        %269 = vmatprep.subr.bf16.mxu0 0
        %270 = vmatpush1.bf16.msra.mxu0 %v242
        %271 = vmatprep.subr.bf16.mxu0 0
        %272 = vmatpush1.bf16.msra.mxu0 0
        %273 = vmatprep.subr.bf16.mxu0 0
        %274 = vmatpush1.bf16.msra.mxu0 0
        %275 = vmatprep.subr.bf16.mxu0 0
        %276 = vmatpush1.bf16.msra.mxu0 0
        %277 = vmatprep.subr.bf16.mxu0 0
        %278 = vmatpush1.bf16.msra.mxu0 0
        %279 = vmatprep.subr.bf16.mxu0 0
        %280 = vmatpush1.bf16.msra.mxu0 0
        %281 = vmatprep.subr.bf16.mxu0 0
        %282 = vmatpush1.bf16.msra.mxu0 0
        %283 = vmatprep.subr.bf16.mxu0 0
        %284 = vmatpush1.bf16.msra.mxu0 0
        %285 = vmatprep.subr.bf16.mxu0 0
        %286 = vmatpush1.bf16.msra.mxu0 0
        %287 = vmatprep.subr.bf16.mxu0 0
        %288 = vmatpush1.bf16.msra.mxu0 0
        %289 = vmatprep.subr.bf16.mxu0 0
        %290 = vmatpush1.bf16.msra.mxu0 0
        %291 = vmatprep.subr.bf16.mxu0 0
        %292 = vmatpush1.bf16.msra.mxu0 0
        %293 = vmatprep.subr.bf16.mxu0 0
        %294 = vmatpush1.bf16.msra.mxu0 0
        %295 = vmatprep.subr.bf16.mxu0 0
        %296 = vmatpush1.bf16.msra.mxu0 0
        %297 = vmatprep.subr.bf16.mxu0 0
        %298 = vmatpush1.bf16.msra.mxu0 0
        %299 = vmatprep.subr.bf16.mxu0 0
        %300 = vmatpush1.bf16.msra.mxu0 0
        %301 = vmatprep.mubr.bf16.mxu0 0
        %302 = vmatmul.mubr.bf16.gmra.mrb[0].mxu0 %v246
        %v303 = vpop.f32.mrb[0].mxu0
        %v304 = vadd.f32 %v237, %v303
        %v305 = vpop.f32.mrb[0].mxu0
        %v306 = vpop.f32.mrb[0].mxu0
        %v307 = vadd.f32 %v237, %v306
        %v308 = vpop.f32.mrb[0].mxu0
        %309 = vmatprep.mubr.bf16.mxu0 0
        %310 = vmatmul.mubr.bf16.gmra.mrb[0].mxu0 %v249
        %v311 = vpop.f32.mrb[0].mxu0
        %v312 = vadd.f32 %v237, %v311
        %v313 = vpop.f32.mrb[0].mxu0
        %v314 = vpop.f32.mrb[0].mxu0
        %v315 = vadd.f32 %v237, %v314
        %v316 = vpop.f32.mrb[0].mxu0
        %317 = vmatprep.mubr.bf16.mxu0 0
        %318 = vmatmul.mubr.bf16.gmra.mrb[0].mxu0 %v252
        %v319 = vpop.f32.mrb[0].mxu0
        %v320 = vadd.f32 %v237, %v319
        %v321 = vpop.f32.mrb[0].mxu0
        %v322 = vpop.f32.mrb[0].mxu0
        %v323 = vadd.f32 %v237, %v322
        %v324 = vpop.f32.mrb[0].mxu0
        %325 = vmatprep.mubr.bf16.mxu0 0
        %326 = vmatmul.mubr.bf16.gmra.mrb[0].mxu0 %v255
        %v327 = vpop.f32.mrb[0].mxu0
        %v328 = vadd.f32 %v237, %v327
        %v329 = vpop.f32.mrb[0].mxu0
        %v330 = vpop.f32.mrb[0].mxu0
        %v331 = vadd.f32 %v237, %v330
        %v332 = vpop.f32.mrb[0].mxu0
        %333 = vmatprep.mubr.bf16.mxu0 0
        %334 = vmatmul.mubr.bf16.gmra.mrb[0].mxu0 %v258
        %v335 = vpop.f32.mrb[0].mxu0
        %v336 = vadd.f32 %v237, %v335
        %v337 = vpop.f32.mrb[0].mxu0
        %v338 = vpop.f32.mrb[0].mxu0
        %v339 = vadd.f32 %v237, %v338
        %v340 = vpop.f32.mrb[0].mxu0
        %341 = vmatprep.mubr.bf16.mxu0 0
        %342 = vmatmul.mubr.bf16.gmra.mrb[0].mxu0 %v261
        %v343 = vpop.f32.mrb[0].mxu0
        %v344 = vadd.f32 %v237, %v343
        %v345 = vpop.f32.mrb[0].mxu0
        %v346 = vpop.f32.mrb[0].mxu0
        %v347 = vadd.f32 %v237, %v346
        %v348 = vpop.f32.mrb[0].mxu0
        %349 = vmatprep.mubr.bf16.mxu0 0
        %350 = vmatmul.mubr.bf16.gmra.mrb[0].mxu0 %v264
        %v351 = vpop.f32.mrb[0].mxu0
        %v352 = vadd.f32 %v237, %v351
        %v353 = vpop.f32.mrb[0].mxu0
        %v354 = vpop.f32.mrb[0].mxu0
        %v355 = vadd.f32 %v237, %v354
        %v356 = vpop.f32.mrb[0].mxu0
        %357 = vmatprep.mubr.bf16.mxu0 0
        %358 = vmatmul.mubr.bf16.gmra.mrb[0].mxu0 %v267
        %v359 = vpop.f32.mrb[0].mxu0
        %v360 = vadd.f32 %v237, %v359
        %v361 = vpop.f32.mrb[0].mxu0
        %v362 = vpop.f32.mrb[0].mxu0
        %v363 = vadd.f32 %v237, %v362
        %v364 = vpop.f32.mrb[0].mxu0
        %365 = vdwg.mxu0
        %v366 = vmax.f32 %v304, 0.0
        %v367 = vmax.f32 %v307, 0.0
        %v368 = vmax.f32 %v312, 0.0
        %v369 = vmax.f32 %v315, 0.0
        %v370 = vmax.f32 %v320, 0.0
        %v371 = vmax.f32 %v323, 0.0
        %v372 = vmax.f32 %v328, 0.0
        %v373 = vmax.f32 %v331, 0.0
        %v374 = vmax.f32 %v336, 0.0
        %v375 = vmax.f32 %v339, 0.0
        %v376 = vmax.f32 %v344, 0.0
        %v377 = vmax.f32 %v347, 0.0
        %v378 = vmax.f32 %v352, 0.0
        %v379 = vmax.f32 %v355, 0.0
        %v380 = vmax.f32 %v360, 0.0
        %v381 = vmax.f32 %v363, 0.0
        %v382 = vpack.c.bf16 %v367, %v366
        %v383 = vpack.c.bf16 %v369, %v368
        %v384 = vpack.c.bf16 %v371, %v370
        %v385 = vpack.c.bf16 %v373, %v372
        %v386 = vpack.c.bf16 %v375, %v374
        %v387 = vpack.c.bf16 %v377, %v376
        %v388 = vpack.c.bf16 %v379, %v378
        %v389 = vpack.c.bf16 %v381, %v380
        %v390 = vlaneseq
        %v391 = vshrl.u32 %v390, 7
        %v392 = vsub.s32 0, %v391
        %v393 = vrot.slane %v208, %v392
        %v410 = vunpack.c.l.b16 %v175
        %v411 = vunpack.c.l.b16 %v176
        %v412 = vunpack.c.l.b16 %v177
        %v413 = vunpack.c.l.b16 %v178
        %v414 = vunpack.c.l.b16 %v179
        %v415 = vunpack.c.l.b16 %v180
        %v416 = vunpack.c.l.b16 %v181
        %v417 = vunpack.c.l.b16 %v182
        %v418 = vunpack.c.l.b16 %v183
        %v419 = vunpack.c.l.b16 %v184
        %v420 = vunpack.c.l.b16 %v185
        %v421 = vunpack.c.l.b16 %v186
        %v422 = vunpack.c.l.b16 %v187
        %v423 = vunpack.c.l.b16 %v188
        %v424 = vunpack.c.l.b16 %v189
        %v425 = vunpack.c.l.b16 %v190
        %v426 = vpack.c.b16 %v411, %v410
        %v427 = vpack.c.b16 %v413, %v412
        %v428 = vpack.c.b16 %v415, %v414
        %v429 = vpack.c.b16 %v417, %v416
        %v430 = vpack.c.b16 %v419, %v418
        %v431 = vpack.c.b16 %v421, %v420
        %v432 = vpack.c.b16 %v423, %v422
        %v433 = vpack.c.b16 %v425, %v424
        %442 = vmatprep.subr.bf16.mxu0 0
        %443 = vmatpush1.bf16.msra.mxu0 %v426
        %444 = vmatprep.subr.bf16.mxu0 0
        %445 = vmatpush1.bf16.msra.mxu0 %v427
        %446 = vmatprep.subr.bf16.mxu0 0
        %447 = vmatpush1.bf16.msra.mxu0 %v428
        %448 = vmatprep.subr.bf16.mxu0 0
        %449 = vmatpush1.bf16.msra.mxu0 %v429
        %450 = vmatprep.subr.bf16.mxu0 0
        %451 = vmatpush1.bf16.msra.mxu0 %v430
        %452 = vmatprep.subr.bf16.mxu0 0
        %453 = vmatpush1.bf16.msra.mxu0 %v431
        %454 = vmatprep.subr.bf16.mxu0 0
        %455 = vmatpush1.bf16.msra.mxu0 %v432
        %456 = vmatprep.subr.bf16.mxu0 0
        %457 = vmatpush1.bf16.msra.mxu0 %v433
        %458 = vmatprep.subr.bf16.mxu0 0
        %459 = vmatpush1.bf16.msra.mxu0 0
        %460 = vmatprep.subr.bf16.mxu0 0
        %461 = vmatpush1.bf16.msra.mxu0 0
        %462 = vmatprep.subr.bf16.mxu0 0
        %463 = vmatpush1.bf16.msra.mxu0 0
        %464 = vmatprep.subr.bf16.mxu0 0
        %465 = vmatpush1.bf16.msra.mxu0 0
        %466 = vmatprep.subr.bf16.mxu0 0
        %467 = vmatpush1.bf16.msra.mxu0 0
        %468 = vmatprep.subr.bf16.mxu0 0
        %469 = vmatpush1.bf16.msra.mxu0 0
        %470 = vmatprep.subr.bf16.mxu0 0
        %471 = vmatpush1.bf16.msra.mxu0 0
        %472 = vmatprep.subr.bf16.mxu0 0
        %473 = vmatpush1.bf16.msra.mxu0 0
        %474 = vmatprep.mubr.bf16.mxu0 0
        %475 = vmatmul.mubr.bf16.gmra.mrb[0].mxu0 %v382
        %v476 = vpop.f32.mrb[0].mxu0
        %v477 = vadd.f32 %v393, %v476
        %v478 = vpop.f32.mrb[0].mxu0
        %v479 = vpop.f32.mrb[0].mxu0
        %v480 = vadd.f32 %v393, %v479
        %v481 = vpop.f32.mrb[0].mxu0
        %482 = vmatprep.mubr.bf16.mxu0 0
        %483 = vmatmul.mubr.bf16.gmra.mrb[0].mxu0 %v383
        %v484 = vpop.f32.mrb[0].mxu0
        %v485 = vadd.f32 %v393, %v484
        %v486 = vpop.f32.mrb[0].mxu0
        %v487 = vpop.f32.mrb[0].mxu0
        %v488 = vadd.f32 %v393, %v487
        %v489 = vpop.f32.mrb[0].mxu0
        %490 = vmatprep.mubr.bf16.mxu0 0
        %491 = vmatmul.mubr.bf16.gmra.mrb[0].mxu0 %v384
        %v492 = vpop.f32.mrb[0].mxu0
        %v493 = vadd.f32 %v393, %v492
        %v494 = vpop.f32.mrb[0].mxu0
        %v495 = vpop.f32.mrb[0].mxu0
        %v496 = vadd.f32 %v393, %v495
        %v497 = vpop.f32.mrb[0].mxu0
        %498 = vmatprep.mubr.bf16.mxu0 0
        %499 = vmatmul.mubr.bf16.gmra.mrb[0].mxu0 %v385
        %v500 = vpop.f32.mrb[0].mxu0
        %v501 = vadd.f32 %v393, %v500
        %v502 = vpop.f32.mrb[0].mxu0
        %v503 = vpop.f32.mrb[0].mxu0
        %v504 = vadd.f32 %v393, %v503
        %v505 = vpop.f32.mrb[0].mxu0
        %506 = vmatprep.mubr.bf16.mxu0 0
        %507 = vmatmul.mubr.bf16.gmra.mrb[0].mxu0 %v386
        %v508 = vpop.f32.mrb[0].mxu0
        %v509 = vadd.f32 %v393, %v508
        %v510 = vpop.f32.mrb[0].mxu0
        %v511 = vpop.f32.mrb[0].mxu0
        %v512 = vadd.f32 %v393, %v511
        %v513 = vpop.f32.mrb[0].mxu0
        %514 = vmatprep.mubr.bf16.mxu0 0
        %515 = vmatmul.mubr.bf16.gmra.mrb[0].mxu0 %v387
        %v516 = vpop.f32.mrb[0].mxu0
        %v517 = vadd.f32 %v393, %v516
        %v518 = vpop.f32.mrb[0].mxu0
        %v519 = vpop.f32.mrb[0].mxu0
        %v520 = vadd.f32 %v393, %v519
        %v521 = vpop.f32.mrb[0].mxu0
        %522 = vmatprep.mubr.bf16.mxu0 0
        %523 = vmatmul.mubr.bf16.gmra.mrb[0].mxu0 %v388
        %v524 = vpop.f32.mrb[0].mxu0
        %v525 = vadd.f32 %v393, %v524
        %v526 = vpop.f32.mrb[0].mxu0
        %v527 = vpop.f32.mrb[0].mxu0
        %v528 = vadd.f32 %v393, %v527
        %v529 = vpop.f32.mrb[0].mxu0
        %530 = vmatprep.mubr.bf16.mxu0 0
        %531 = vmatmul.mubr.bf16.gmra.mrb[0].mxu0 %v389
        %v532 = vpop.f32.mrb[0].mxu0
        %v533 = vadd.f32 %v393, %v532
        %v534 = vpop.f32.mrb[0].mxu0
        %v535 = vpop.f32.mrb[0].mxu0
        %v536 = vadd.f32 %v393, %v535
        %v537 = vpop.f32.mrb[0].mxu0
        %538 = vdwg.mxu0
        %v539 = vmax.f32 %v477, 0.0
        %v540 = vmax.f32 %v480, 0.0
        %v541 = vmax.f32 %v485, 0.0
        %v542 = vmax.f32 %v488, 0.0
        %v543 = vmax.f32 %v493, 0.0
        %v544 = vmax.f32 %v496, 0.0
        %v545 = vmax.f32 %v501, 0.0
        %v546 = vmax.f32 %v504, 0.0
        %v547 = vmax.f32 %v509, 0.0
        %v548 = vmax.f32 %v512, 0.0
        %v549 = vmax.f32 %v517, 0.0
        %v550 = vmax.f32 %v520, 0.0
        %v551 = vmax.f32 %v525, 0.0
        %v552 = vmax.f32 %v528, 0.0
        %v553 = vmax.f32 %v533, 0.0
        %v554 = vmax.f32 %v536, 0.0
        %v555 = vpack.c.bf16 %v540, %v539
        %v556 = vpack.c.bf16 %v542, %v541
        %v557 = vpack.c.bf16 %v544, %v543
        %v558 = vpack.c.bf16 %v546, %v545
        %v559 = vpack.c.bf16 %v548, %v547
        %v560 = vpack.c.bf16 %v550, %v549
        %v561 = vpack.c.bf16 %v552, %v551
        %v562 = vpack.c.bf16 %v554, %v553
        %v563 = vlaneseq
        %v564 = vshrl.u32 %v563, 7
        %v565 = vsub.s32 0, %v564
        %v566 = vrot.slane %v209, %v565
        %v583 = vunpack.c.l.b16 %v191
        %v584 = vunpack.c.l.b16 %v192
        %v585 = vunpack.c.l.b16 %v193
        %v586 = vunpack.c.l.b16 %v194
        %v587 = vunpack.c.l.b16 %v195
        %v588 = vunpack.c.l.b16 %v196
        %v589 = vunpack.c.l.b16 %v197
        %v590 = vunpack.c.l.b16 %v198
        %v591 = vunpack.c.l.b16 %v199
        %v592 = vunpack.c.l.b16 %v200
        %v593 = vunpack.c.l.b16 %v201
        %v594 = vunpack.c.l.b16 %v202
        %v595 = vunpack.c.l.b16 %v203
        %v596 = vunpack.c.l.b16 %v204
        %v597 = vunpack.c.l.b16 %v205
        %v598 = vunpack.c.l.b16 %v206
        %v599 = vpack.c.b16 %v584, %v583
        %v600 = vpack.c.b16 %v586, %v585
        %v601 = vpack.c.b16 %v588, %v587
        %v602 = vpack.c.b16 %v590, %v589
        %v603 = vpack.c.b16 %v592, %v591
        %v604 = vpack.c.b16 %v594, %v593
        %v605 = vpack.c.b16 %v596, %v595
        %v606 = vpack.c.b16 %v598, %v597
        %615 = vmatprep.subr.bf16.mxu0 0
        %616 = vmatpush1.bf16.msra.mxu0 %v599
        %617 = vmatprep.subr.bf16.mxu0 0
        %618 = vmatpush1.bf16.msra.mxu0 %v600
        %619 = vmatprep.subr.bf16.mxu0 0
        %620 = vmatpush1.bf16.msra.mxu0 %v601
        %621 = vmatprep.subr.bf16.mxu0 0
        %622 = vmatpush1.bf16.msra.mxu0 %v602
        %623 = vmatprep.subr.bf16.mxu0 0
        %624 = vmatpush1.bf16.msra.mxu0 %v603
        %625 = vmatprep.subr.bf16.mxu0 0
        %626 = vmatpush1.bf16.msra.mxu0 %v604
        %627 = vmatprep.subr.bf16.mxu0 0
        %628 = vmatpush1.bf16.msra.mxu0 %v605
        %629 = vmatprep.subr.bf16.mxu0 0
        %630 = vmatpush1.bf16.msra.mxu0 %v606
        %631 = vmatprep.subr.bf16.mxu0 0
        %632 = vmatpush1.bf16.msra.mxu0 0
        %633 = vmatprep.subr.bf16.mxu0 0
        %634 = vmatpush1.bf16.msra.mxu0 0
        %635 = vmatprep.subr.bf16.mxu0 0
        %636 = vmatpush1.bf16.msra.mxu0 0
        %637 = vmatprep.subr.bf16.mxu0 0
        %638 = vmatpush1.bf16.msra.mxu0 0
        %639 = vmatprep.subr.bf16.mxu0 0
        %640 = vmatpush1.bf16.msra.mxu0 0
        %641 = vmatprep.subr.bf16.mxu0 0
        %642 = vmatpush1.bf16.msra.mxu0 0
        %643 = vmatprep.subr.bf16.mxu0 0
        %644 = vmatpush1.bf16.msra.mxu0 0
        %645 = vmatprep.subr.bf16.mxu0 0
        %646 = vmatpush1.bf16.msra.mxu0 0
        %647 = vmatprep.mubr.bf16.mxu0 0
        %648 = vmatmul.mubr.bf16.gmra.mrb[0].mxu0 %v555
        %v649 = vpop.f32.mrb[0].mxu0
        %v650 = vadd.f32 %v566, %v649
        %v651 = vpop.f32.mrb[0].mxu0
        %v652 = vpop.f32.mrb[0].mxu0
        %v653 = vadd.f32 %v566, %v652
        %v654 = vpop.f32.mrb[0].mxu0
        %655 = vmatprep.mubr.bf16.mxu0 0
        %656 = vmatmul.mubr.bf16.gmra.mrb[0].mxu0 %v556
        %v657 = vpop.f32.mrb[0].mxu0
        %v658 = vadd.f32 %v566, %v657
        %v659 = vpop.f32.mrb[0].mxu0
        %v660 = vpop.f32.mrb[0].mxu0
        %v661 = vadd.f32 %v566, %v660
        %v662 = vpop.f32.mrb[0].mxu0
        %663 = vmatprep.mubr.bf16.mxu0 0
        %664 = vmatmul.mubr.bf16.gmra.mrb[0].mxu0 %v557
        %v665 = vpop.f32.mrb[0].mxu0
        %v666 = vadd.f32 %v566, %v665
        %v667 = vpop.f32.mrb[0].mxu0
        %v668 = vpop.f32.mrb[0].mxu0
        %v669 = vadd.f32 %v566, %v668
        %v670 = vpop.f32.mrb[0].mxu0
        %671 = vmatprep.mubr.bf16.mxu0 0
        %672 = vmatmul.mubr.bf16.gmra.mrb[0].mxu0 %v558
        %v673 = vpop.f32.mrb[0].mxu0
        %v674 = vadd.f32 %v566, %v673
        %v675 = vpop.f32.mrb[0].mxu0
        %v676 = vpop.f32.mrb[0].mxu0
        %v677 = vadd.f32 %v566, %v676
        %v678 = vpop.f32.mrb[0].mxu0
        %679 = vmatprep.mubr.bf16.mxu0 0
        %680 = vmatmul.mubr.bf16.gmra.mrb[0].mxu0 %v559
        %v681 = vpop.f32.mrb[0].mxu0
        %v682 = vadd.f32 %v566, %v681
        %v683 = vpop.f32.mrb[0].mxu0
        %v684 = vpop.f32.mrb[0].mxu0
        %v685 = vadd.f32 %v566, %v684
        %v686 = vpop.f32.mrb[0].mxu0
        %687 = vmatprep.mubr.bf16.mxu0 0
        %688 = vmatmul.mubr.bf16.gmra.mrb[0].mxu0 %v560
        %v689 = vpop.f32.mrb[0].mxu0
        %v690 = vadd.f32 %v566, %v689
        %v691 = vpop.f32.mrb[0].mxu0
        %v692 = vpop.f32.mrb[0].mxu0
        %v693 = vadd.f32 %v566, %v692
        %v694 = vpop.f32.mrb[0].mxu0
        %695 = vmatprep.mubr.bf16.mxu0 0
        %696 = vmatmul.mubr.bf16.gmra.mrb[0].mxu0 %v561
        %v697 = vpop.f32.mrb[0].mxu0
        %v698 = vadd.f32 %v566, %v697
        %v699 = vpop.f32.mrb[0].mxu0
        %v700 = vpop.f32.mrb[0].mxu0
        %v701 = vadd.f32 %v566, %v700
        %v702 = vpop.f32.mrb[0].mxu0
        %703 = vmatprep.mubr.bf16.mxu0 0
        %704 = vmatmul.mubr.bf16.gmra.mrb[0].mxu0 %v562
        %v705 = vpop.f32.mrb[0].mxu0
        %v706 = vadd.f32 %v566, %v705
        %v707 = vpop.f32.mrb[0].mxu0
        %v708 = vpop.f32.mrb[0].mxu0
        %v709 = vadd.f32 %v566, %v708
        %v710 = vpop.f32.mrb[0].mxu0
        %711 = vdwg.mxu0
        %v712 = vlaneseq
        %v713 = vand.u32 %v712, 127
        %vm714 = vcmp.lt.s32.totalorder %v713, 2
        %v715 = vsel %vm714, %v650, -1e+30
        %v716 = vsel %vm714, %v653, -1e+30
        %v717 = vsel %vm714, %v658, -1e+30
        %v718 = vsel %vm714, %v661, -1e+30
        %v719 = vsel %vm714, %v666, -1e+30
        %v720 = vsel %vm714, %v669, -1e+30
        %v721 = vsel %vm714, %v674, -1e+30
        %v722 = vsel %vm714, %v677, -1e+30
        %v723 = vsel %vm714, %v682, -1e+30
        %v724 = vsel %vm714, %v685, -1e+30
        %v725 = vsel %vm714, %v690, -1e+30
        %v726 = vsel %vm714, %v693, -1e+30
        %v727 = vsel %vm714, %v698, -1e+30
        %v728 = vsel %vm714, %v701, -1e+30
        %v729 = vsel %vm714, %v706, -1e+30
        %v730 = vsel %vm714, %v709, -1e+30
        %731 = vmax.xlane.f32.xlu0 %v715
        %v732 = vpop.xlane.xlu0 %731
        %733 = vmax.xlane.f32.xlu0 %v716
        %v734 = vpop.xlane.xlu0 %733
        %735 = vmax.xlane.f32.xlu0 %v717
        %v736 = vpop.xlane.xlu0 %735
        %737 = vmax.xlane.f32.xlu0 %v718
        %v738 = vpop.xlane.xlu0 %737
        %739 = vmax.xlane.f32.xlu0 %v719
        %v740 = vpop.xlane.xlu0 %739
        %741 = vmax.xlane.f32.xlu0 %v720
        %v742 = vpop.xlane.xlu0 %741
        %743 = vmax.xlane.f32.xlu0 %v721
        %v744 = vpop.xlane.xlu0 %743
        %745 = vmax.xlane.f32.xlu0 %v722
        %v746 = vpop.xlane.xlu0 %745
        %747 = vmax.xlane.f32.xlu0 %v723
        %v748 = vpop.xlane.xlu0 %747
        %749 = vmax.xlane.f32.xlu0 %v724
        %v750 = vpop.xlane.xlu0 %749
        %751 = vmax.xlane.f32.xlu0 %v725
        %v752 = vpop.xlane.xlu0 %751
        %753 = vmax.xlane.f32.xlu0 %v726
        %v754 = vpop.xlane.xlu0 %753
        %755 = vmax.xlane.f32.xlu0 %v727
        %v756 = vpop.xlane.xlu0 %755
        %757 = vmax.xlane.f32.xlu0 %v728
        %v758 = vpop.xlane.xlu0 %757
        %759 = vmax.xlane.f32.xlu0 %v729
        %v760 = vpop.xlane.xlu0 %759
        %761 = vmax.xlane.f32.xlu0 %v730
        %v762 = vpop.xlane.xlu0 %761
        %v763 = vsub.f32 %v715, %v732
        %v764 = vsub.f32 %v716, %v734
        %v765 = vsub.f32 %v717, %v736
        %v766 = vsub.f32 %v718, %v738
        %v767 = vsub.f32 %v719, %v740
        %v768 = vsub.f32 %v720, %v742
        %v769 = vsub.f32 %v721, %v744
        %v770 = vsub.f32 %v722, %v746
        %v771 = vsub.f32 %v723, %v748
        %v772 = vsub.f32 %v724, %v750
        %v773 = vsub.f32 %v725, %v752
        %v774 = vsub.f32 %v726, %v754
        %v775 = vsub.f32 %v727, %v756
        %v776 = vsub.f32 %v728, %v758
        %v777 = vsub.f32 %v729, %v760
        %v778 = vsub.f32 %v730, %v762
        %v779 = vmul.f32 %v763, 1.442695
        %v780 = vpow.pop %v779
        %v781 = vmul.f32 %v764, 1.442695
        %v782 = vpow.pop %v781
        %v783 = vmul.f32 %v765, 1.442695
        %v784 = vpow.pop %v783
        %v785 = vmul.f32 %v766, 1.442695
        %v786 = vpow.pop %v785
        %v787 = vmul.f32 %v767, 1.442695
        %v788 = vpow.pop %v787
        %v789 = vmul.f32 %v768, 1.442695
        %v790 = vpow.pop %v789
        %v791 = vmul.f32 %v769, 1.442695
        %v792 = vpow.pop %v791
        %v793 = vmul.f32 %v770, 1.442695
        %v794 = vpow.pop %v793
        %v795 = vmul.f32 %v771, 1.442695
        %v796 = vpow.pop %v795
        %v797 = vmul.f32 %v772, 1.442695
        %v798 = vpow.pop %v797
        %v799 = vmul.f32 %v773, 1.442695
        %v800 = vpow.pop %v799
        %v801 = vmul.f32 %v774, 1.442695
        %v802 = vpow.pop %v801
        %v803 = vmul.f32 %v775, 1.442695
        %v804 = vpow.pop %v803
        %v805 = vmul.f32 %v776, 1.442695
        %v806 = vpow.pop %v805
        %v807 = vmul.f32 %v777, 1.442695
        %v808 = vpow.pop %v807
        %v809 = vmul.f32 %v778, 1.442695
        %v810 = vpow.pop %v809
        %811 = vadd.xlane.f32.xlu0 %v780
        %v812 = vpop.xlane.xlu0 %811
        %813 = vadd.xlane.f32.xlu0 %v782
        %v814 = vpop.xlane.xlu0 %813
        %815 = vadd.xlane.f32.xlu0 %v784
        %v816 = vpop.xlane.xlu0 %815
        %817 = vadd.xlane.f32.xlu0 %v786
        %v818 = vpop.xlane.xlu0 %817
        %819 = vadd.xlane.f32.xlu0 %v788
        %v820 = vpop.xlane.xlu0 %819
        %821 = vadd.xlane.f32.xlu0 %v790
        %v822 = vpop.xlane.xlu0 %821
        %823 = vadd.xlane.f32.xlu0 %v792
        %v824 = vpop.xlane.xlu0 %823
        %825 = vadd.xlane.f32.xlu0 %v794
        %v826 = vpop.xlane.xlu0 %825
        %827 = vadd.xlane.f32.xlu0 %v796
        %v828 = vpop.xlane.xlu0 %827
        %829 = vadd.xlane.f32.xlu0 %v798
        %v830 = vpop.xlane.xlu0 %829
        %831 = vadd.xlane.f32.xlu0 %v800
        %v832 = vpop.xlane.xlu0 %831
        %833 = vadd.xlane.f32.xlu0 %v802
        %v834 = vpop.xlane.xlu0 %833
        %835 = vadd.xlane.f32.xlu0 %v804
        %v836 = vpop.xlane.xlu0 %835
        %837 = vadd.xlane.f32.xlu0 %v806
        %v838 = vpop.xlane.xlu0 %837
        %839 = vadd.xlane.f32.xlu0 %v808
        %v840 = vpop.xlane.xlu0 %839
        %841 = vadd.xlane.f32.xlu0 %v810
        %v842 = vpop.xlane.xlu0 %841
        %v843 = vrcp.pop %v812
        %v844 = vrcp.pop %v814
        %v845 = vrcp.pop %v816
        %v846 = vrcp.pop %v818
        %v847 = vrcp.pop %v820
        %v848 = vrcp.pop %v822
        %v849 = vrcp.pop %v824
        %v850 = vrcp.pop %v826
        %v851 = vrcp.pop %v828
        %v852 = vrcp.pop %v830
        %v853 = vrcp.pop %v832
        %v854 = vrcp.pop %v834
        %v855 = vrcp.pop %v836
        %v856 = vrcp.pop %v838
        %v857 = vrcp.pop %v840
        %v858 = vrcp.pop %v842
        %v859 = vmul.f32 %v780, %v843
        %v860 = vmul.f32 %v782, %v844
        %v861 = vmul.f32 %v784, %v845
        %v862 = vmul.f32 %v786, %v846
        %v863 = vmul.f32 %v788, %v847
        %v864 = vmul.f32 %v790, %v848
        %v865 = vmul.f32 %v792, %v849
        %v866 = vmul.f32 %v794, %v850
        %v867 = vmul.f32 %v796, %v851
        %v868 = vmul.f32 %v798, %v852
        %v869 = vmul.f32 %v800, %v853
        %v870 = vmul.f32 %v802, %v854
        %v871 = vmul.f32 %v804, %v855
        %v872 = vmul.f32 %v806, %v856
        %v873 = vmul.f32 %v808, %v857
        %v874 = vmul.f32 %v810, %v858
        %875 = vst [vmem:[%s164] sm:$0xff] %v859
        %876 = vst [vmem:[%s164 + $0x8] sm:$0xff] %v860
        %877 = vst [vmem:[%s164 + $0x10] sm:$0xff] %v861
        %878 = vst [vmem:[%s164 + $0x18] sm:$0xff] %v862
        %879 = vst [vmem:[%s164 + $0x20] sm:$0xff] %v863
        %880 = vst [vmem:[%s164 + $0x28] sm:$0xff] %v864
        %881 = vst [vmem:[%s164 + $0x30] sm:$0xff] %v865
        %882 = vst [vmem:[%s164 + $0x38] sm:$0xff] %v866
        %883 = vst [vmem:[%s164 + $0x40] sm:$0xff] %v867
        %884 = vst [vmem:[%s164 + $0x48] sm:$0xff] %v868
        %885 = vst [vmem:[%s164 + $0x50] sm:$0xff] %v869
        %886 = vst [vmem:[%s164 + $0x58] sm:$0xff] %v870
        %887 = vst [vmem:[%s164 + $0x60] sm:$0xff] %v871
        %888 = vst [vmem:[%s164 + $0x68] sm:$0xff] %v872
        %889 = vst [vmem:[%s164 + $0x70] sm:$0xff] %v873
        %890 = vst [vmem:[%s164 + $0x78] sm:$0xff] %v874
        %s891 = sand.u32 %s93, 1
        %s892 = scalar_lea.sflag [#allocation3], %s891
        %s893 = sand.u32 %s93, 1
        %s894 = smul.addr %s893, 128
        %s895 = scalar_lea.vmem [#allocation2], %s894
        // Predicated region
        $region33: #{tpu_custom_call.1} parent=31 // pred_check
          %p896 = pneg %p103
        $region34: #{tpu_custom_call.1} parent=31 // pred_check_branch
          %898 = sbr.rel (%p896) target = $region36
        $region35: #{tpu_custom_call.1} parent=31 // pred_region
          %s899 = smul.u32 16, %s17
          %s901 = ssub.s32 2048, 2048
          %902 = vsyncadd %s892, %s901
          %s903 = smul.addr %s899, 128
          %s904 = scalar_lea.hbm %s3, %s903
          %s905 = sshll.u32 %s895, 4
          %s906 = int_to_ptr.vmem [resolvable:$true] %s905
          %911 = dma.vmem_to_hbm [thread:$0]  %s906, 2048, %s904, %s892, 128, 128, 8
        $region36: #{tpu_custom_call.1} parent=31 // pred_fallthru
          _
      $region32: #{tpu_custom_call.1} parent=5 // pred_fallthru
        _
      %p912 = scmp.le.s32.totalorder 2, %s12
      // Predicated region
      $region37: #{tpu_custom_call.1} parent=5 // pred_check
        %p913 = pneg %p912
      $region38: #{tpu_custom_call.1} parent=5 // pred_check_branch
        %915 = sbr.rel (%p913) target = $region40
      $region39: #{tpu_custom_call.1} parent=5 // pred_region
        %s916 = ssub.s32 %s12, 2
        // Predicated region
        $region41: #{tpu_custom_call.1} parent=39 // pred_check
          %p917 = pneg %p109
        $region42: #{tpu_custom_call.1} parent=39 // pred_check_branch
          %919 = sbr.rel (%p917) target = $region44
        $region43: #{tpu_custom_call.1} parent=39 // pred_region
          %s920 = sand.u32 %s94, 1
          %s921 = scalar_lea.sflag [#allocation3], %s920
          %s922 = sand.u32 %s94, 1
          %s923 = smul.addr %s922, 128
          %s924 = scalar_lea.vmem [#allocation2], %s923
          %925 = dma.done %s921, 2048
        $region44: #{tpu_custom_call.1} parent=39 // pred_fallthru
          _
      $region40: #{tpu_custom_call.1} parent=5 // pred_fallthru
        _
    $region6: #{tpu_custom_call.1} parent=1 // loop_footer
      %s16 = sadd.s32 1, %s12
    $region7: #{tpu_custom_call.1} parent=1 // loop_footer_branch
      %11 = sbr.rel target = $region3
    $region8: #{tpu_custom_call.1} parent=1 // loop_exit
      _
    %926 = vsyncpa [#allocation3], 1
    %s927 = scalar_lea.sflag [#allocation3], 1
    %928 = vsyncpa %s927, 1

</llo_original>
